<compile_context>
chip_gen: v7x
topology: tpu7x:2x2x1
jax: 0.10.0
libtpu: 0.0.40
codegen_flags: <defaults>
</compile_context>

<pallas_src>
import functools

import jax
import jax.numpy as jnp
from jax.experimental import pallas as pl
from jax.experimental.pallas import tpu as pltpu


# ---------------------------------------------------------------------------
# One-time pltpu.roll sign-convention probe.  The conv shifts rely on roll;
# calibrating whether a positive shift moves elements toward higher indices
# (jnp.roll convention) keeps the kernel correct under either convention.
# ---------------------------------------------------------------------------
def _roll_probe_kernel(x_ref, o_ref):
    o_ref[...] = pltpu.roll(x_ref[...], shift=1, axis=1)


@functools.lru_cache(maxsize=None)
def _roll_shift_sign():
    x = jnp.tile(jnp.arange(128, dtype=jnp.float32)[None, :], (8, 1))
    y = pl.pallas_call(
        _roll_probe_kernel,
        out_shape=jax.ShapeDtypeStruct((8, 128), jnp.float32),
    )(x)
    matches_jnp_roll = bool(jax.device_get(y)[0, 0] == 127.0)
    # We need shifted[p] = plane[p + off]:
    #   jnp.roll convention  (y[i] = x[i - s])  ->  s = -off
    #   opposite convention  (y[i] = x[i + s])  ->  s = +off
    return -1 if matches_jnp_roll else 1


def _spatial_attention_kernel(x_ref, row_ref, col_ref, w_ref, o_ref,
                              sum_ref, max_ref, *, C, H, W, shift_sign):
    """One (batch-tile, channel-tile) grid step.

    x_ref   : VMEM (bn, bc, HWp)    input slab, native dtype
    row_ref : VMEM (1, HWp) int32   row index of each flattened position
    col_ref : VMEM (1, HWp) int32   col index of each flattened position
    w_ref   : SMEM (98,) f32        flattened conv weight (1, 2, 7, 7)
    o_ref   : VMEM (bn, 1, HWp)     output (input dtype), written on last step
    sum_ref : VMEM (bn, HWp) f32    running channel sum  (scratch)
    max_ref : VMEM (bn, HWp) f32    running channel max  (scratch)
    """
    c_idx = pl.program_id(1)

    @pl.when(c_idx == 0)
    def _init():
        sum_ref[...] = jnp.zeros_like(sum_ref)
        max_ref[...] = jnp.full(max_ref.shape, -jnp.inf, dtype=max_ref.dtype)

    # Channel-tile reduction in the input's native dtype: no materialized f32
    # copy of the block; only the (bn, HWp) results are widened to f32.
    x_blk = x_ref[...]                                          # (bn, bc, HWp)
    sum_ref[...] = sum_ref[...] + jnp.sum(x_blk, axis=1, dtype=jnp.float32)
    max_ref[...] = jnp.maximum(max_ref[...],
                               jnp.max(x_blk, axis=1).astype(jnp.float32))

    @pl.when(c_idx == pl.num_programs(1) - 1)
    def _finalize():
        bn = sum_ref.shape[0]
        HWp = sum_ref.shape[1]

        avg = sum_ref[...] * (1.0 / C)                          # (bn, HWp) f32
        mx = max_ref[...]
        # Stack avg/max along the sublane axis: ONE roll per tap (XLU) instead
        # of two.
        plane = jnp.concatenate([avg, mx], axis=0)              # (2*bn, HWp)

        row = row_ref[...]                                      # (1, HWp) int32
        col = col_ref[...]
        # Zero-padding boundary masks, hoisted out of the tap loop.
        row_ok = [(row >= -d) & (row < H - d) for d in range(-3, 4)]
        col_ok = [(col >= -d) & (col < W - d) for d in range(-3, 4)]
        masks = [[row_ok[ki] & col_ok[kj] for kj in range(7)] for ki in range(7)]

        # 7x7 conv = 49 lane-rolls (XLU) + masked scalar*vector MACs (VPU),
        # spread over 4 independent accumulators for ILP.
        accs = [jnp.zeros((bn, HWp), jnp.float32) for _ in range(4)]
        t = 0
        for ki in range(7):
            di = ki - 3
            for kj in range(7):
                dj = kj - 3
                w_avg = w_ref[ki * 7 + kj]                      # scalar (SMEM)
                w_max = w_ref[49 + ki * 7 + kj]                 # scalar (SMEM)
                shift = (shift_sign * (di * W + dj)) % HWp
                rolled = plane if shift == 0 else pltpu.roll(plane, shift=shift,
                                                             axis=1)
                s_avg = rolled[:bn]
                s_max = rolled[bn:]
                term = w_avg * s_avg + w_max * s_max
                if di == 0 and dj == 0:
                    masked = term                               # center: all valid
                else:
                    masked = jnp.where(masks[ki][kj], term, 0.0)
                accs[t % 4] = accs[t % 4] + masked
                t += 1

        acc = (accs[0] + accs[1]) + (accs[2] + accs[3])
        o_ref[:, 0, :] = jax.nn.sigmoid(acc).astype(o_ref.dtype)


def _vmem_capacity_bytes():
    """Per-core VMEM capacity; conservative (v7x) fallback if the query fails."""
    try:
        info = pltpu.get_tpu_info()
        cap = getattr(info, "vmem_capacity_bytes", None)
        if cap:
            return int(cap)
    except Exception:
        pass
    return 64 * 1024 * 1024


def _c_tile_candidates(C):
    """Channel tiles obeying the (8,128) rule on the block's second-minor dim:
    multiples of 8 that divide C, plus C itself."""
    cands = {C}
    for d in range(8, C, 8):
        if C % d == 0:
            cands.add(d)
    return sorted(cands)


def _pick_tiles(N, C, HW_pad, in_itemsize, out_itemsize, budget_bytes):
    """Largest (block_n, block_c) whose *real* VMEM footprint fits the budget,
    preferring >=2 batch tiles so v7x's second TensorCore is used."""
    def footprint(bn, bc):
        plane = bn * HW_pad * 4
        return (2 * bn * bc * HW_pad * in_itemsize    # x block, double-buffered
                + 2 * bn * HW_pad * out_itemsize      # out block, double-buffered
                + 2 * plane                           # sum/max f32 scratch
                + 10 * plane                          # conv-epilogue temporaries
                + 4 * HW_pad * 4)                     # row/col id planes

    c_cands = _c_tile_candidates(C)
    n_cands = [d for d in range(1, N + 1) if N % d == 0]
    n_pref = [d for d in n_cands if N // d >= 2] or n_cands

    best_key, best = None, (n_pref[0], c_cands[0])    # smallest-tile fallback
    for bn in n_pref:
        for bc in c_cands:
            if footprint(bn, bc) > budget_bytes:
                continue
            key = (bn * bc, bc, bn)
            if best_key is None or key > best_key:
                best_key, best = key, (bn, bc)
    return best


def spatial_attention(x, conv_w, *, vmem_limit_bytes=None, block_budget_bytes=None):
    """x: (N, C, H, W) float, conv_w: (1, 2, 7, 7) -> (N, 1, H, W) in x.dtype."""
    N, C, H, W = x.shape
    HW = H * W
    # Lane-dense layout: flatten spatial dims and pad the minor axis to a
    # multiple of 128 lanes.  Pad lanes only feed masked taps / get sliced off.
    HW_pad = max(128, ((HW + 127) // 128) * 128)

    x_flat = x.reshape(N, C, HW)
    if HW_pad != HW:
        x_flat = jnp.pad(x_flat, ((0, 0), (0, 0), (0, HW_pad - HW)))
    w_flat = conv_w.reshape(-1).astype(jnp.float32)             # (98,)
    pos = jnp.arange(HW_pad, dtype=jnp.int32)
    row_ids = (pos // W).reshape(1, HW_pad)
    col_ids = (pos % W).reshape(1, HW_pad)

    # Per-generation VMEM budget: query capacity, leave compiler headroom
    # (v7x: 64 MiB -> ~48 MiB, v5e/v6e: 128 MiB -> ~112 MiB).
    vmem_cap = _vmem_capacity_bytes()
    if vmem_limit_bytes is None:
        vmem_limit_bytes = max(int(vmem_cap * 3 // 4),
                               vmem_cap - 16 * 1024 * 1024)
    if block_budget_bytes is None:
        block_budget_bytes = int(vmem_limit_bytes * 0.9)

    in_itemsize = jnp.dtype(x.dtype).itemsize
    out_itemsize = in_itemsize
    block_n, block_c = _pick_tiles(N, C, HW_pad, in_itemsize, out_itemsize,
                                   block_budget_bytes)
    shift_sign = _roll_shift_sign()

    kernel = functools.partial(
        _spatial_attention_kernel, C=C, H=H, W=W, shift_sign=shift_sign)

    out_flat = pl.pallas_call(
        kernel,
        out_shape=jax.ShapeDtypeStruct((N, 1, HW_pad), x.dtype),
        grid=(N // block_n, C // block_c),
        in_specs=[
            pl.BlockSpec((block_n, block_c, HW_pad), lambda n, c: (n, c, 0)),
            pl.BlockSpec((1, HW_pad), lambda n, c: (0, 0)),
            pl.BlockSpec((1, HW_pad), lambda n, c: (0, 0)),
            pl.BlockSpec(memory_space=pltpu.MemorySpace.SMEM),
        ],
        out_specs=pl.BlockSpec((block_n, 1, HW_pad), lambda n, c: (n, 0, 0)),
        scratch_shapes=[
            pltpu.VMEM((block_n, HW_pad), jnp.float32),   # running channel sum
            pltpu.VMEM((block_n, HW_pad), jnp.float32),   # running channel max
        ],
        compiler_params=pltpu.CompilerParams(
            dimension_semantics=("parallel", "arbitrary"),
            vmem_limit_bytes=int(vmem_limit_bytes),
        ),
    )(x_flat, row_ids, col_ids, w_flat)

    return out_flat[:, :, :HW].reshape(N, 1, H, W)


def spatial_attention_reference(x, conv_w):
    """Pure-JAX reference with the exact PyTorch Conv2d(2,1,7,p=3) semantics."""
    N, C, H, W = x.shape
    x32 = x.astype(jnp.float32)
    avg = jnp.mean(x32, axis=1, keepdims=True)
    mx = jnp.max(x32, axis=1, keepdims=True)
    catp = jnp.pad(jnp.concatenate([avg, mx], axis=1),
                   ((0, 0), (0, 0), (3, 3), (3, 3)))
    w = conv_w.astype(jnp.float32)
    out = jnp.zeros((N, 1, H, W), jnp.float32)
    for c in range(2):
        for ki in range(7):
            for kj in range(7):
                out = out + w[0, c, ki, kj] * catp[:, c:c + 1, ki:ki + H, kj:kj + W]
    return jax.nn.sigmoid(out)


if __name__ == "__main__":
    key = jax.random.PRNGKey(0)
    kx1, kw, kx2, kx3 = jax.random.split(key, 4)

    conv_w = 0.1 * jax.random.normal(kw, (1, 2, 7, 7), dtype=jnp.float32)

    # Test 1: canonical small shape, f32, H*W already a multiple of 128.
    x1 = jax.random.normal(kx1, (2, 4, 16, 16), dtype=jnp.float32)
    out1 = jax.block_until_ready(spatial_attention(x1, conv_w))
    ref1 = spatial_attention_reference(x1, conv_w)
    assert out1.shape == (2, 1, 16, 16) and out1.dtype == x1.dtype
    assert jnp.allclose(out1.astype(jnp.float32), ref1, atol=1e-5, rtol=1e-5), (
        float(jnp.max(jnp.abs(out1.astype(jnp.float32) - ref1))))

    # Test 2: H != W with non-128-multiple H*W (exercises lane padding + masks).
    x2 = jax.random.normal(kx2, (2, 5, 10, 12), dtype=jnp.float32)
    out2 = jax.block_until_ready(spatial_attention(x2, conv_w))
    ref2 = spatial_attention_reference(x2, conv_w)
    assert out2.shape == (2, 1, 10, 12)
    assert jnp.allclose(out2.astype(jnp.float32), ref2, atol=1e-5, rtol=1e-5), (
        float(jnp.max(jnp.abs(out2.astype(jnp.float32) - ref2))))

    # Test 3: bf16 input + small budget to force multiple channel grid steps
    # (exercises the native-dtype reduction, accumulators and dtype-matched out).
    x3 = jax.random.normal(kx3, (2, 16, 10, 12), dtype=jnp.bfloat16)
    out3 = jax.block_until_ready(
        spatial_attention(x3, conv_w, block_budget_bytes=16 * 1024))
    ref3 = spatial_attention_reference(x3, conv_w)
    assert out3.dtype == jnp.bfloat16 and out3.shape == (2, 1, 10, 12)
    assert jnp.allclose(out3.astype(jnp.float32), ref3, atol=2e-2, rtol=2e-2), (
        float(jnp.max(jnp.abs(out3.astype(jnp.float32) - ref3))))

    print("KERNEL_OK")
</pallas_src>

<mosaic_0001>
module attributes {stable_mosaic.version = 11 : i64} {
  func.func @_roll_probe_kernel(%arg0: memref<8x128xf32, #tpu.memory_space<vmem>>, %arg1: memref<8x128xf32, #tpu.memory_space<vmem>>) attributes {dimension_semantics = [], scalar_prefetch = 0 : i64, scratch_operands = 0 : i64, tpu.core_type = #tpu.core_type<tc>} {
    %c0 = arith.constant 0 : index
    %c0_0 = arith.constant 0 : index
    %0 = vector.load %arg0[%c0, %c0_0] : memref<8x128xf32, #tpu.memory_space<vmem>>, vector<8x128xf32>
    %c1_i32 = arith.constant 1 : i32
    %1 = tpu.dynamic_rotate %0 by %c1_i32 dim 1 : vector<8x128xf32>, i32 -> vector<8x128xf32>
    %c0_1 = arith.constant 0 : index
    %c0_2 = arith.constant 0 : index
    %2 = vector.load %arg1[%c0_1, %c0_2] : memref<8x128xf32, #tpu.memory_space<vmem>>, vector<8x128xf32>
    tpu.vector_store %arg1[%c0_1, %c0_2], %1 {strides = array<i32>} : memref<8x128xf32, #tpu.memory_space<vmem>>, vector<8x128xf32>,
    return
  }
}

</mosaic_0001>

<llo_original>
// kernel: tpu_custom_call.1
$region0: #{tpu_custom_call.1}
  #allocation0 [shape = 'u32[]', space=smem, size = 0x4, offset = 0x4, fixed_abs, tag = 'smem constant byte address 0x4 - core index']
  #allocation1 [shape = 'u32[144,128]{1,0:T(1,128)}', space=vmem, size = 0x12000, scoped, tag = 'internal scratch']
  %s0 = inlined_call_operand.hbm [shape: f32[8,128], index: 0, kind: input, shape index: {}]
  %s1 = inlined_call_operand.hbm [shape: f32[8,128], index: 1, kind: output, shape index: {}]
  %s2 = sld [smem:[#allocation0]]
  $region18: #{tpu_custom_call.1} parent=0
    _
  %s4 = ssub.s32 1, %s2
  %s5 = scalar_select 0, %s4, %s2
  $region1: #{tpu_custom_call.1} parent=0
    #allocation2 [shape = 'u8[4096]{0}', space=vmem, size = 0x1000, scoped, tag = 'input window, operand 0, single buffered']
    #allocation3 [shape = 's32[1]{0}', space=sflag, size = 0x4, scoped, tag = 'scoped memory for tpu_custom_call.1']
    #allocation4 [shape = 's32[1]{0}', space=sflag, size = 0x4, scoped, tag = 'scoped memory for tpu_custom_call.1']
    #allocation5 [shape = 'u8[4096]{0}', space=vmem, size = 0x1000, scoped, tag = 'output window, operand 0, single buffered']
    %6 = vsyncpa [#allocation3], 0
    %7 = vsyncpa [#allocation4], 0
    // Predicated region
    $region2: #{tpu_custom_call.1} parent=1 // pred_check
      _
    $region3: #{tpu_custom_call.1} parent=1 // pred_check_branch
      %9 = sbr.rel (0) target = $region5
    $region4: #{tpu_custom_call.1} parent=1 // pred_region
      %s11 = ssub.s32 128, 128
      %12 = vsyncadd [#allocation3], %s11
      %s14 = sshll.u32 [#allocation2], 4
      %s15 = int_to_ptr.vmem [resolvable:$true] %s14
      %17 = dma.hbm_to_vmem [thread:$0]  %s0, 128, %s15, [#allocation3]
    $region5: #{tpu_custom_call.1} parent=1 // pred_fallthru
      _
    // Predicated region
    $region6: #{tpu_custom_call.1} parent=1 // pred_check
      _
    $region7: #{tpu_custom_call.1} parent=1 // pred_check_branch
      %19 = sbr.rel (0) target = $region9
    $region8: #{tpu_custom_call.1} parent=1 // pred_region
      %20 = dma.done [#allocation3], 128
    $region9: #{tpu_custom_call.1} parent=1 // pred_fallthru
      _
    %v21 = vld [vmem:[#allocation2] sm:$0xff]
    %22 = vrot.lane.b32.xlu0 %v21, 1
    %v23 = vpop.permute.xlu0 %22
    %24 = vst [vmem:[#allocation5] sm:$0xff] %v23
    // Predicated region
    $region10: #{tpu_custom_call.1} parent=1 // pred_check
      _
    $region11: #{tpu_custom_call.1} parent=1 // pred_check_branch
      %26 = sbr.rel (0) target = $region13
    $region12: #{tpu_custom_call.1} parent=1 // pred_region
      %s28 = ssub.s32 128, 128
      %29 = vsyncadd [#allocation4], %s28
      %s31 = sshll.u32 [#allocation5], 4
      %s32 = int_to_ptr.vmem [resolvable:$true] %s31
      %34 = dma.vmem_to_hbm [thread:$0]  %s32, 128, %s1, [#allocation4]
    $region13: #{tpu_custom_call.1} parent=1 // pred_fallthru
      _
    // Predicated region
    $region14: #{tpu_custom_call.1} parent=1 // pred_check
      _
    $region15: #{tpu_custom_call.1} parent=1 // pred_check_branch
      %36 = sbr.rel (0) target = $region17
    $region16: #{tpu_custom_call.1} parent=1 // pred_region
      %37 = dma.done [#allocation4], 128
    $region17: #{tpu_custom_call.1} parent=1 // pred_fallthru
      _
    %38 = vsyncpa [#allocation3], 1
    %39 = vsyncpa [#allocation4], 1

</llo_original>
